<compile_context>
chip_gen: v5e
topology: v5e:2x2
jax: 0.10.0
libtpu: 0.0.40
codegen_flags: <defaults>
</compile_context>

<pallas_src>
import jax
import jax.numpy as jnp
from jax.experimental import pallas as pl
from jax.experimental.pallas import tpu as pltpu


def _weighted_layer_pool_kernel(w_ref, x_ref, o_ref, acc_ref):
    # w_ref:   (L_used,) f32 in SMEM (scalar-prefetched, pre-normalized weights)
    # x_ref:   (TS, H)   one layer's sequence tile (input dtype)
    # o_ref:   (TS, H)   output tile (input dtype)
    # acc_ref: (TS, H)   f32 accumulator scratch (persists across the L axis)
    l = pl.program_id(2)

    @pl.when(l == 0)
    def _():
        acc_ref[...] = jnp.zeros_like(acc_ref)

    # Per-layer accumulate: scalar weight (SMEM) * upcast tile, into f32 acc.
    acc_ref[...] += w_ref[l] * x_ref[...].astype(jnp.float32)

    @pl.when(l == pl.num_programs(2) - 1)
    def _():
        o_ref[...] = acc_ref[...].astype(o_ref.dtype)


def weighted_layer_pooling(all_hidden_states, layer_weights, layer_start, *, seq_tile=512):
    """all_hidden_states: (L_total, B, S, H); layer_weights: (L_total - layer_start,)."""
    L_total, B, S, H = all_hidden_states.shape
    L_used = L_total - layer_start
    assert layer_weights.shape == (L_used,)

    # Fold the 1/sum(w) normalization into the weights (one tiny op outside
    # the kernel, done in f32).
    w_f32 = layer_weights.astype(jnp.float32)
    w_norm = w_f32 / jnp.sum(w_f32)

    # Sequence tile: multiple of 8 (sublane) and capped; H stays whole in the
    # block (lane-dense). Falls back to the full axis if S isn't 8-aligned.
    ts = min(S, seq_tile)
    if ts % 8 != 0:
        ts = S  # full-axis blocks are always legal
    num_s_tiles = pl.cdiv(S, ts)

    grid = (B, num_s_tiles, L_used)

    return pl.pallas_call(
        _weighted_layer_pool_kernel,
        out_shape=jax.ShapeDtypeStruct((B, S, H), all_hidden_states.dtype),
        grid_spec=pltpu.PrefetchScalarGridSpec(
            num_scalar_prefetch=1,       # w_norm -> SMEM
            grid=grid,
            in_specs=[
                # One layer / one batch / one seq tile per grid step.
                # layer_start is baked into the index_map (no host-side slice).
                pl.BlockSpec(
                    (None, None, ts, H),
                    lambda b, s, l, w: (layer_start + l, b, s, 0),
                ),
            ],
            out_specs=pl.BlockSpec((None, ts, H), lambda b, s, l, w: (b, s, 0)),
            scratch_shapes=[pltpu.VMEM((ts, H), jnp.float32)],
        ),
        compiler_params=pltpu.CompilerParams(
            dimension_semantics=("parallel", "parallel", "arbitrary"),
        ),
    )(w_norm, all_hidden_states)


if __name__ == "__main__":
    # Module config (matches PyTorch __init__ defaults)
    num_hidden_layers = 12
    layer_start = 4
    n_used = num_hidden_layers + 1 - layer_start   # 9

    # Deterministic parameter init: torch.tensor([1]*n, dtype=float) -> ones
    layer_weights = jnp.ones((n_used,), dtype=jnp.float32)

    # Small example input: (num_hidden_layers+1, batch, seq, hidden)
    B, S, H = 2, 8, 32
    key = jax.random.PRNGKey(0)
    all_hidden_states = jax.random.normal(
        key, (num_hidden_layers + 1, B, S, H), dtype=jnp.float32
    )

    out = weighted_layer_pooling(all_hidden_states, layer_weights, layer_start)
    out = jax.block_until_ready(out)

    # Reference (plain JAX) check of the PyTorch forward semantics
    x_used = all_hidden_states[layer_start:]
    ref = (layer_weights[:, None, None, None] * x_used).sum(axis=0) / layer_weights.sum()
    assert out.shape == (B, S, H)
    assert jnp.allclose(out, ref, atol=1e-5, rtol=1e-5)

    print("KERNEL_OK")
</pallas_src>

<mosaic_0001>
module attributes {stable_mosaic.version = 11 : i64} {
  func.func @_weighted_layer_pool_kernel(%arg0: i32, %arg1: i32, %arg2: i32, %arg3: memref<9xf32, #tpu.memory_space<smem>>, %arg4: memref<1x1x8x32xf32, #tpu.memory_space<vmem>>, %arg5: memref<1x8x32xf32, #tpu.memory_space<vmem>>, %arg6: memref<8x32xf32, #tpu.memory_space<vmem>>) attributes {dimension_semantics = [#tpu.dimension_semantics<parallel>, #tpu.dimension_semantics<parallel>, #tpu.dimension_semantics<arbitrary>], iteration_bounds = array<i64: 2, 1, 9>, scalar_prefetch = 1 : i64, scratch_operands = 1 : i64, tpu.core_type = #tpu.core_type<tc>, window_params = [{transform_indices = @transform_0, window_bounds = array<i64: 1, 1, 8, 32>}, {transform_indices = @transform_1, window_bounds = array<i64: 1, 8, 32>}]} {
    %c0_i32 = arith.constant 0 : i32
    %0 = arith.cmpi eq, %arg2, %c0_i32 : i32
    %1 = arith.extui %0 : i1 to i32
    %c0_i32_0 = arith.constant 0 : i32
    %2 = arith.cmpi ne, %1, %c0_i32_0 : i32
    scf.if %2 {
      %cst = arith.constant 0.000000e+00 : f32
      %15 = vector.broadcast %cst : f32 to vector<8x32xf32>
      %c0_9 = arith.constant 0 : index
      %c0_10 = arith.constant 0 : index
      %16 = vector.load %arg6[%c0_9, %c0_10] : memref<8x32xf32, #tpu.memory_space<vmem>>, vector<8x32xf32>
      tpu.vector_store %arg6[%c0_9, %c0_10], %15 {strides = array<i32>} : memref<8x32xf32, #tpu.memory_space<vmem>>, vector<8x32xf32>,
    } else {
    }
    %c0 = arith.constant 0 : index
    %c0_1 = arith.constant 0 : index
    %3 = vector.load %arg6[%c0, %c0_1] : memref<8x32xf32, #tpu.memory_space<vmem>>, vector<8x32xf32>
    %4 = arith.index_cast %arg2 : i32 to index
    %5 = memref.load %arg3[%4] : memref<9xf32, #tpu.memory_space<smem>>
    %c0_2 = arith.constant 0 : index
    %c0_3 = arith.constant 0 : index
    %c0_4 = arith.constant 0 : index
    %c0_5 = arith.constant 0 : index
    %6 = vector.load %arg4[%c0_2, %c0_3, %c0_4, %c0_5] : memref<1x1x8x32xf32, #tpu.memory_space<vmem>>, vector<1x1x8x32xf32>
    %7 = vector.shape_cast %6 : vector<1x1x8x32xf32> to vector<8x32xf32>
    %8 = vector.broadcast %5 : f32 to vector<8x32xf32>
    %9 = arith.mulf %8, %7 : vector<8x32xf32>
    %10 = arith.addf %3, %9 : vector<8x32xf32>
    %c0_6 = arith.constant 0 : index
    %c0_7 = arith.constant 0 : index
    %11 = vector.load %arg6[%c0_6, %c0_7] : memref<8x32xf32, #tpu.memory_space<vmem>>, vector<8x32xf32>
    tpu.vector_store %arg6[%c0_6, %c0_7], %10 {strides = array<i32>} : memref<8x32xf32, #tpu.memory_space<vmem>>, vector<8x32xf32>,
    %c8_i32 = arith.constant 8 : i32
    %12 = arith.cmpi eq, %arg2, %c8_i32 : i32
    %13 = arith.extui %12 : i1 to i32
    %c0_i32_8 = arith.constant 0 : i32
    %14 = arith.cmpi ne, %13, %c0_i32_8 : i32
    scf.if %14 {
      %c0_9 = arith.constant 0 : index
      %c0_10 = arith.constant 0 : index
      %15 = vector.load %arg6[%c0_9, %c0_10] : memref<8x32xf32, #tpu.memory_space<vmem>>, vector<8x32xf32>
      %c0_11 = arith.constant 0 : index
      %c0_12 = arith.constant 0 : index
      %c0_13 = arith.constant 0 : index
      %16 = vector.load %arg5[%c0_11, %c0_12, %c0_13] : memref<1x8x32xf32, #tpu.memory_space<vmem>>, vector<1x8x32xf32>
      %17 = vector.shape_cast %16 : vector<1x8x32xf32> to vector<8x32xf32>
      %18 = vector.shape_cast %15 : vector<8x32xf32> to vector<1x8x32xf32>
      tpu.vector_store %arg5[%c0_11, %c0_12, %c0_13], %18 {strides = array<i32>} : memref<1x8x32xf32, #tpu.memory_space<vmem>>, vector<1x8x32xf32>,
    } else {
    }
    return
  }
  func.func @transform_0(%arg0: i32, %arg1: i32, %arg2: i32, %arg3: memref<9xf32, #tpu.memory_space<smem>>) -> (i32, i32, i32, i32) {
    %c4_i32 = arith.constant 4 : i32
    %0 = arith.addi %c4_i32, %arg2 : i32
    %c0_i32 = arith.constant 0 : i32
    %c0_i32_0 = arith.constant 0 : i32
    return %0, %arg0, %arg1, %c0_i32 : i32, i32, i32, i32
  }
  func.func @transform_1(%arg0: i32, %arg1: i32, %arg2: i32, %arg3: memref<9xf32, #tpu.memory_space<smem>>) -> (i32, i32, i32) {
    %c0_i32 = arith.constant 0 : i32
    %c0_i32_0 = arith.constant 0 : i32
    return %arg0, %arg1, %c0_i32 : i32, i32, i32
  }
}

</mosaic_0001>

<llo_original>
// kernel: tpu_custom_call.1
$region0: #{tpu_custom_call.1}
  #allocation0 [shape = 'u32[]', space=smem, size = 0x4, offset = 0x4, fixed_abs, tag = 'smem constant byte address 0x4 - core index']
  #allocation1 [shape = 'u32[72,128]{1,0:T(1,128)}', space=vmem, size = 0x9000, scoped, tag = 'internal scratch']
  #allocation2 [shape = 'f32[8,32]{1,0:T(8,128)}', space=vmem, size = 0x1000, scoped, tag = 'scratch operand']
  #allocation3 [shape = 's32[1]{0}', space=sflag, size = 0x4, scoped, tag = 'scoped memory for tpu_custom_call.1']
  #allocation4 [shape = 'u8[512]{0}', space=smem, size = 0x200, scoped, tag = 'prefetched SMEM operand 0']
  %s0 = inlined_call_operand.hbm [shape: f32[9], index: 0, kind: input, shape index: {}]
  %s1 = inlined_call_operand.hbm [shape: f32[13,2,8,32], index: 1, kind: input, shape index: {}]
  %s2 = inlined_call_operand.hbm [shape: f32[2,8,32], index: 2, kind: output, shape index: {}]
  %s3 = sld [smem:[#allocation0]]
  $region49: #{tpu_custom_call.1} parent=0
    _
  %s5 = ssub.s32 1, %s3
  %s6 = scalar_select 0, %s5, %s3
  %s8 = sshll.u32 %s0, 4
  %s9 = int_to_ptr.hbm [resolvable:$true] %s8
  %11 = dma.hbm_to_smem %s9, 16, [#allocation4], [#allocation3]
  %13 = dma.done [#allocation3], 16
  %14 = sfence
  $region1: #{tpu_custom_call.1} parent=0
    #allocation5 [shape = 'u8[8192]{0}', space=vmem, size = 0x2000, scoped, tag = 'input window, operand 1']
    #allocation6 [shape = 's32[2]{0}', space=sflag, size = 0x8, scoped, tag = 'scoped memory for tpu_custom_call.1']
    #allocation7 [shape = 's32[2]{0}', space=sflag, size = 0x8, scoped, tag = 'scoped memory for tpu_custom_call.1']
    #allocation8 [shape = 'u8[8192]{0}', space=vmem, size = 0x2000, scoped, tag = 'output window, operand 0']
    %15 = vsyncpa [#allocation6], 0
    %s16 = scalar_lea.sflag [#allocation6], 1
    %17 = vsyncpa %s16, 0
    %18 = vsyncpa [#allocation7], 0
    %s19 = scalar_lea.sflag [#allocation7], 1
    %20 = vsyncpa %s19, 0
    loop: start=0, step=1, limit=20
    $region2: #{tpu_custom_call.1} parent=1 // loop_pre_header
      _
    $region3: #{tpu_custom_call.1} parent=1 // loop_header
      %s22 = sphi 0, %s26
      %p23 = scmp.ge.s32.totalorder %s22, 20
      %s29 = sphi 0, %s48
      %s30 = sphi 0, %s44
      %s31 = sphi 0, %s40
      %s32 = sphi 0, %s29
      %s33 = sphi 0, %s30
      %s34 = sphi 0, %s31
      %s35 = sphi 0, %s32
      %s36 = sphi 0, %s33
      %s37 = sphi 0, %s34
      %s57 = sphi 0, %s59
      %s60 = sphi 0, %s57
      %s61 = sphi 0, %s60
      %s77 = sphi 0, %s61
      %s85 = sphi 0, %s87
      %s88 = sphi 0, %s85
      %s89 = sphi 0, %s88
      %s105 = sphi 0, %s89
    $region4: #{tpu_custom_call.1} parent=1 // loop_header_branch
      %25 = sbr.rel (%p23) target = $region8
    $region5: #{tpu_custom_call.1} parent=1 // loop_body
      %s27 = ssub.s32 %s22, 1
      %s28 = ssub.s32 %s22, 2
      %s38 = sadd.s32 1, %s31
      %p39 = scmp.ge.s32.totalorder %s38, 9
      %s40 = scalar_select %p39, 0, %s38
      %s41 = sadd.s32 1, %s30
      %s42 = scalar_select %p39, %s41, %s30
      %p43 = scmp.ge.s32.totalorder %s42, 1
      %s44 = scalar_select %p43, 0, %s42
      %s45 = sadd.s32 1, %s29
      %s46 = scalar_select %p43, %s45, %s29
      %p47 = scmp.ge.s32.totalorder %s46, 2
      %s48 = scalar_select %p47, 0, %s46
      %s49 = sadd.s32 %s31, 4
      %s50 = sadd.s32 %s40, 4
      %s51 = ssub.s32 %s49, %s50
      %s52 = ssub.s32 %s29, %s48
      %s53 = sor.u32 %s51, %s52
      %s54 = ssub.s32 %s30, %s44
      %s55 = sor.u32 %s53, %s54
      %p56 = scmp.eq.s32.totalorder %s55, 0
      %s58 = sadd.s32 %s57, 1
      %s59 = scalar_select %p56, %s57, %s58
      %p62 = pneg %p56
      %p63 = scmp.eq.s32.totalorder %s22, 17
      %p64 = por %p62, %p63
      %p65 = scmp.ne.s32.totalorder %s57, %s60
      %p66 = scmp.eq.s32.totalorder %s22, 0
      %p67 = por %p65, %p66
      %p68 = scmp.ne.s32.totalorder %s57, %s60
      %p69 = scmp.eq.s32.totalorder %s27, 17
      %p70 = por %p68, %p69
      %p71 = scmp.ne.s32.totalorder %s60, %s61
      %p72 = scmp.eq.s32.totalorder %s27, 0
      %p73 = por %p71, %p72
      %p74 = scmp.ne.s32.totalorder %s60, %s61
      %p75 = scmp.eq.s32.totalorder %s28, 17
      %p76 = por %p74, %p75
      %p78 = scmp.ne.s32.totalorder %s61, %s77
      %p79 = scmp.eq.s32.totalorder %s28, 0
      %p80 = por %p78, %p79
      %s81 = ssub.s32 %s29, %s48
      %s82 = ssub.s32 %s30, %s44
      %s83 = sor.u32 %s81, %s82
      %p84 = scmp.eq.s32.totalorder %s83, 0
      %s86 = sadd.s32 %s85, 1
      %s87 = scalar_select %p84, %s85, %s86
      %p90 = pneg %p84
      %p91 = scmp.eq.s32.totalorder %s22, 17
      %p92 = por %p90, %p91
      %p93 = scmp.ne.s32.totalorder %s85, %s88
      %p94 = scmp.eq.s32.totalorder %s22, 0
      %p95 = por %p93, %p94
      %p96 = scmp.ne.s32.totalorder %s85, %s88
      %p97 = scmp.eq.s32.totalorder %s27, 17
      %p98 = por %p96, %p97
      %p99 = scmp.ne.s32.totalorder %s88, %s89
      %p100 = scmp.eq.s32.totalorder %s27, 0
      %p101 = por %p99, %p100
      %p102 = scmp.ne.s32.totalorder %s88, %s89
      %p103 = scmp.eq.s32.totalorder %s28, 17
      %p104 = por %p102, %p103
      %p106 = scmp.ne.s32.totalorder %s89, %s105
      %p107 = scmp.eq.s32.totalorder %s28, 0
      %p108 = por %p106, %p107
      %p109 = scmp.le.s32.totalorder 1, %s22
      %p110 = scmp.lt.s32.totalorder %s22, 19
      %p111 = pnand %p109, %p110
      %p112 = pneg %p111
      // Predicated region
      $region9: #{tpu_custom_call.1} parent=5 // pred_check
        _
      $region10: #{tpu_custom_call.1} parent=5 // pred_check_branch
        %114 = sbr.rel (%p111) target = $region12
      $region11: #{tpu_custom_call.1} parent=5 // pred_region
        %s115 = ssub.s32 %s22, 1
      $region12: #{tpu_custom_call.1} parent=5 // pred_fallthru
        _
      %p116 = scmp.lt.s32.totalorder %s22, 18
      // Predicated region
      $region13: #{tpu_custom_call.1} parent=5 // pred_check
        %p117 = pneg %p116
      $region14: #{tpu_custom_call.1} parent=5 // pred_check_branch
        %119 = sbr.rel (%p117) target = $region16
      $region15: #{tpu_custom_call.1} parent=5 // pred_region
        // Predicated region
        $region17: #{tpu_custom_call.1} parent=15 // pred_check
          %p120 = pneg %p67
        $region18: #{tpu_custom_call.1} parent=15 // pred_check_branch
          %122 = sbr.rel (%p120) target = $region20
        $region19: #{tpu_custom_call.1} parent=15 // pred_region
          %s123 = sand.u32 %s57, 1
          %s124 = scalar_lea.sflag [#allocation6], %s123
          %s125 = sand.u32 %s57, 1
          %s126 = smul.addr %s125, 8
          %s127 = scalar_lea.vmem [#allocation5], %s126
          %s128 = sadd.s32 %s31, 4
          %130 = vsyncadd %s124, 0
          %s131 = sadd.s32 %s30, %s29
          %s132 = smul.addr %s128, 2
          %s133 = sadd.s32 %s131, %s132
          %s134 = smul.addr %s133, 8
          %s135 = scalar_lea.hbm %s1, %s134
          %s137 = sshll.u32 %s135, 4
          %s138 = int_to_ptr.hbm [resolvable:$true] %s137
          %s139 = sshll.u32 %s127, 4
          %s140 = int_to_ptr.vmem [resolvable:$true] %s139
          %142 = dma.hbm_to_vmem [thread:$0]  %s138, 128, %s140, %s124
        $region20: #{tpu_custom_call.1} parent=15 // pred_fallthru
          _
      $region16: #{tpu_custom_call.1} parent=5 // pred_fallthru
        _
      %p143 = scmp.le.s32.totalorder 1, %s22
      %p144 = scmp.lt.s32.totalorder %s22, 19
      %p145 = pnand %p143, %p144
      %p146 = pneg %p145
      // Predicated region
      $region21: #{tpu_custom_call.1} parent=5 // pred_check
        _
      $region22: #{tpu_custom_call.1} parent=5 // pred_check_branch
        %148 = sbr.rel (%p145) target = $region24
      $region23: #{tpu_custom_call.1} parent=5 // pred_region
        %s149 = ssub.s32 %s22, 1
        %s150 = sand.u32 %s60, 1
        %s151 = scalar_lea.sflag [#allocation6], %s150
        %s152 = sand.u32 %s60, 1
        %s153 = smul.addr %s152, 8
        %s154 = scalar_lea.vmem [#allocation5], %s153
        // Predicated region
        $region25: #{tpu_custom_call.1} parent=23 // pred_check
          %p155 = pneg %p73
        $region26: #{tpu_custom_call.1} parent=23 // pred_check_branch
          %157 = sbr.rel (%p155) target = $region28
        $region27: #{tpu_custom_call.1} parent=23 // pred_region
          %159 = dma.done %s151, 128
        $region28: #{tpu_custom_call.1} parent=23 // pred_fallthru
          _
        %s160 = sand.u32 %s60, 1
        %s161 = scalar_lea.sflag [#allocation6], %s160
        %s162 = sand.u32 %s60, 1
        %s163 = smul.addr %s162, 8
        %s164 = scalar_lea.vmem [#allocation5], %s163
        %p165 = pneg %p73
        %p166 = pneg %p70
        %p167 = pneg %p101
        %p168 = pneg %p98
        %s169 = sand.u32 %s88, 1
        %s170 = scalar_lea.sflag [#allocation7], %s169
        %s171 = sand.u32 %s88, 1
        %s172 = smul.addr %s171, 8
        %s173 = scalar_lea.vmem [#allocation8], %s172
        %s174 = sadd.s32 %s34, 4
        %p175 = scmp.eq.s32.totalorder %s34, 0
        // Predicated region
        $region29: #{tpu_custom_call.1} parent=23 // pred_check
          %p176 = pneg %p175
        $region30: #{tpu_custom_call.1} parent=23 // pred_check_branch
          %178 = sbr.rel (%p176) target = $region32
        $region31: #{tpu_custom_call.1} parent=23 // pred_region
          %vm179 = vcmask 261120
          %180 = vst.msk [vmem:[#allocation2] sm:$0xff] %vm179, 0.0
        $region32: #{tpu_custom_call.1} parent=23 // pred_fallthru
          _
        %v181 = vld [vmem:[#allocation2] sm:$0xff]
        %s182 = sld [smem:[#allocation4 + %s34]]
        %v183 = vld [vmem:[%s154] sm:$0xff]
        %v184 = vstv %s182
        %v185 = vmul.f32 %v184, %v183
        %v186 = vadd.f32 %v181, %v185
        %vm187 = vcmask 261120
        %188 = vst.msk [vmem:[#allocation2] sm:$0xff] %vm187, %v186
        %p189 = scmp.eq.s32.totalorder %s34, 8
        // Predicated region
        $region33: #{tpu_custom_call.1} parent=23 // pred_check
          %p190 = pneg %p189
        $region34: #{tpu_custom_call.1} parent=23 // pred_check_branch
          %192 = sbr.rel (%p190) target = $region36
        $region35: #{tpu_custom_call.1} parent=23 // pred_region
          %v193 = vld [vmem:[#allocation2] sm:$0xff]
          %194 = vst.msk [vmem:[%s173] sm:$0xff] %vm187, %v193
        $region36: #{tpu_custom_call.1} parent=23 // pred_fallthru
          _
        %s195 = sand.u32 %s88, 1
        %s196 = scalar_lea.sflag [#allocation7], %s195
        %s197 = sand.u32 %s88, 1
        %s198 = smul.addr %s197, 8
        %s199 = scalar_lea.vmem [#allocation8], %s198
        // Predicated region
        $region37: #{tpu_custom_call.1} parent=23 // pred_check
          %p200 = pneg %p98
        $region38: #{tpu_custom_call.1} parent=23 // pred_check_branch
          %202 = sbr.rel (%p200) target = $region40
        $region39: #{tpu_custom_call.1} parent=23 // pred_region
          %204 = vsyncadd %s196, 0
          %s205 = sadd.s32 %s33, %s32
          %s206 = smul.addr %s205, 8
          %s207 = scalar_lea.hbm %s2, %s206
          %s209 = sshll.u32 %s199, 4
          %s210 = int_to_ptr.vmem [resolvable:$true] %s209
          %s211 = sshll.u32 %s207, 4
          %s212 = int_to_ptr.hbm [resolvable:$true] %s211
          %214 = dma.vmem_to_hbm [thread:$0]  %s210, 128, %s212, %s196
        $region40: #{tpu_custom_call.1} parent=23 // pred_fallthru
          _
      $region24: #{tpu_custom_call.1} parent=5 // pred_fallthru
        _
      %p215 = scmp.le.s32.totalorder 2, %s22
      // Predicated region
      $region41: #{tpu_custom_call.1} parent=5 // pred_check
        %p216 = pneg %p215
      $region42: #{tpu_custom_call.1} parent=5 // pred_check_branch
        %218 = sbr.rel (%p216) target = $region44
      $region43: #{tpu_custom_call.1} parent=5 // pred_region
        %s219 = ssub.s32 %s22, 2
        // Predicated region
        $region45: #{tpu_custom_call.1} parent=43 // pred_check
          %p220 = pneg %p104
        $region46: #{tpu_custom_call.1} parent=43 // pred_check_branch
          %222 = sbr.rel (%p220) target = $region48
        $region47: #{tpu_custom_call.1} parent=43 // pred_region
          %s223 = sand.u32 %s89, 1
          %s224 = scalar_lea.sflag [#allocation7], %s223
          %s225 = sand.u32 %s89, 1
          %s226 = smul.addr %s225, 8
          %s227 = scalar_lea.vmem [#allocation8], %s226
          %229 = dma.done %s224, 128
        $region48: #{tpu_custom_call.1} parent=43 // pred_fallthru
          _
      $region44: #{tpu_custom_call.1} parent=5 // pred_fallthru
        _
    $region6: #{tpu_custom_call.1} parent=1 // loop_footer
      %s26 = sadd.s32 1, %s22
    $region7: #{tpu_custom_call.1} parent=1 // loop_footer_branch
      %21 = sbr.rel target = $region3
    $region8: #{tpu_custom_call.1} parent=1 // loop_exit
      _
    %230 = vsyncpa [#allocation6], 1
    %s231 = scalar_lea.sflag [#allocation6], 1
    %232 = vsyncpa %s231, 1
    %233 = vsyncpa [#allocation7], 1
    %s234 = scalar_lea.sflag [#allocation7], 1
    %235 = vsyncpa %s234, 1

</llo_original>
